<compile_context>
chip_gen: v7x
topology: tpu7x:2x2x1
jax: 0.10.0
libtpu: 0.0.40
codegen_flags: <defaults>
</compile_context>

<pallas_src>
import jax
import jax.numpy as jnp
from jax.experimental import pallas as pl
from jax.experimental.pallas import tpu as pltpu


def _dqn_kernel(x_ref, w1_ref, b1_ref, w2_ref, b2_ref, w3_ref, b3_ref,
                w4_ref, b4_ref, o_ref):
    """Fused MLP forward: (Linear+ReLU) x3 -> Linear. Dropout = identity (eval)."""
    # Layer 1: Linear(input_size -> hidden) + ReLU
    h = jnp.dot(x_ref[...], w1_ref[...], preferred_element_type=jnp.float32)
    h = jnp.maximum(h + b1_ref[...], 0.0)
    # Layer 2: Linear(hidden -> hidden) + ReLU
    h = jnp.dot(h, w2_ref[...], preferred_element_type=jnp.float32)
    h = jnp.maximum(h + b2_ref[...], 0.0)
    # Layer 3: Linear(hidden -> hidden//2) + ReLU
    h = jnp.dot(h, w3_ref[...], preferred_element_type=jnp.float32)
    h = jnp.maximum(h + b3_ref[...], 0.0)
    # Layer 4: Linear(hidden//2 -> output_size_padded), no activation
    o = jnp.dot(h, w4_ref[...], preferred_element_type=jnp.float32)
    o_ref[...] = (o + b4_ref[...]).astype(o_ref.dtype)


def _round_up(n, m):
    return -(-n // m) * m


def dqn_forward(x, params, *, batch_tile=256):
    """DQNNetwork forward pass with a fused Pallas kernel.

    x: (B, input_size) f32.  params: dict of w1..w4 (in, out) and b1..b4 (1, out).
    batch_tile: rows per grid step when B > batch_tile (128 is a good v5e
    choice, 256 for v6e/v7x).  Must divide B and be a multiple of 8.
    """
    w1, b1 = params["w1"], params["b1"]
    w2, b2 = params["w2"], params["b2"]
    w3, b3 = params["w3"], params["b3"]
    w4, b4 = params["w4"], params["b4"]

    B, in_size = x.shape
    hidden = w1.shape[1]
    mid = w3.shape[1]
    out_size = w4.shape[1]

    # Lane-dense final layer: zero-pad N up to a multiple of 128 so the output
    # store is an unmasked full-lane vst (largest single measured lever).
    n_pad = _round_up(out_size, 128)
    if n_pad != out_size:
        w4 = jnp.pad(w4, ((0, 0), (0, n_pad - out_size)))
        b4 = jnp.pad(b4, ((0, 0), (0, n_pad - out_size)))

    flops = 2 * B * (in_size * hidden + hidden * hidden + hidden * mid
                     + mid * n_pad)
    bytes_accessed = 4 * (x.size + w1.size + b1.size + w2.size + b2.size
                          + w3.size + b3.size + w4.size + b4.size + B * n_pad)
    cost = pl.CostEstimate(flops=flops, transcendentals=0,
                           bytes_accessed=bytes_accessed)

    args = (x, w1, b1, w2, b2, w3, b3, w4, b4)

    if B <= batch_tile:
        # Single invocation, no grid: whole working set (<~1 MB) lives in VMEM,
        # no pipeline setup / per-step overhead, no double buffering.
        out = pl.pallas_call(
            _dqn_kernel,
            out_shape=jax.ShapeDtypeStruct((B, n_pad), x.dtype),
            cost_estimate=cost,
        )(*args)
    else:
        assert batch_tile % 8 == 0, "batch_tile must be a multiple of 8"
        assert B % batch_tile == 0, "batch must be divisible by batch_tile"
        # Weights/biases: constant block index -> resident across the grid.
        full = lambda a: pl.BlockSpec(a.shape, lambda i: (0, 0))
        out = pl.pallas_call(
            _dqn_kernel,
            out_shape=jax.ShapeDtypeStruct((B, n_pad), x.dtype),
            grid_spec=pltpu.PrefetchScalarGridSpec(
                num_scalar_prefetch=0,
                grid=(B // batch_tile,),
                in_specs=[
                    pl.BlockSpec((batch_tile, in_size), lambda i: (i, 0)),
                    full(w1), full(b1),
                    full(w2), full(b2),
                    full(w3), full(b3),
                    full(w4), full(b4),
                ],
                out_specs=pl.BlockSpec((batch_tile, n_pad), lambda i: (i, 0)),
            ),
            compiler_params=pltpu.CompilerParams(
                dimension_semantics=("parallel",)),  # megacore: batch tiles split across TCs
            cost_estimate=cost,
        )(*args)

    return out[:, :out_size] if n_pad != out_size else out


def init_params(key, input_size, hidden_size, output_size):
    """PyTorch-style nn.Linear default init: U(-1/sqrt(fan_in), 1/sqrt(fan_in)).

    Weights stored as (in, out) for the x @ W layout used in the kernel.
    """
    dims = [(input_size, hidden_size),
            (hidden_size, hidden_size),
            (hidden_size, hidden_size // 2),
            (hidden_size // 2, output_size)]
    params = {}
    for idx, (fan_in, fan_out) in enumerate(dims, start=1):
        key, kw, kb = jax.random.split(key, 3)
        bound = 1.0 / jnp.sqrt(float(fan_in))
        params[f"w{idx}"] = jax.random.uniform(
            kw, (fan_in, fan_out), jnp.float32, -bound, bound)
        params[f"b{idx}"] = jax.random.uniform(
            kb, (1, fan_out), jnp.float32, -bound, bound)
    return params


def reference_forward(x, params):
    """Pure-JAX reference (eval mode: dropout = identity)."""
    h = jnp.maximum(x @ params["w1"] + params["b1"], 0.0)
    h = jnp.maximum(h @ params["w2"] + params["b2"], 0.0)
    h = jnp.maximum(h @ params["w3"] + params["b3"], 0.0)
    return h @ params["w4"] + params["b4"]


if __name__ == "__main__":
    # Small shapes consistent with the module: state vector -> Q-values.
    batch, input_size, hidden_size, output_size = 16, 16, 32, 4

    key = jax.random.PRNGKey(0)
    key, kx = jax.random.split(key)
    x = jax.random.normal(kx, (batch, input_size), jnp.float32)
    params = init_params(key, input_size, hidden_size, output_size)

    # Toy batch: grid-less single-invocation path.
    out = jax.block_until_ready(dqn_forward(x, params))
    ref = reference_forward(x, params)
    assert out.shape == (batch, output_size)
    assert jnp.allclose(out, ref, atol=1e-5, rtol=1e-5), "mismatch vs reference"

    # Larger batch: exercises the tiled "parallel" batch-grid path.
    key, kb = jax.random.split(key)
    x_big = jax.random.normal(kb, (512, input_size), jnp.float32)
    out_big = jax.block_until_ready(dqn_forward(x_big, params, batch_tile=256))
    ref_big = reference_forward(x_big, params)
    assert out_big.shape == (512, output_size)
    assert jnp.allclose(out_big, ref_big, atol=1e-5, rtol=1e-5), \
        "mismatch vs reference (tiled path)"

    print("KERNEL_OK")
</pallas_src>

<mosaic_0001>
module attributes {stable_mosaic.version = 11 : i64} {
  func.func @_dqn_kernel(%arg0: memref<16x16xf32, #tpu.memory_space<vmem>>, %arg1: memref<16x32xf32, #tpu.memory_space<vmem>>, %arg2: memref<1x32xf32, #tpu.memory_space<vmem>>, %arg3: memref<32x32xf32, #tpu.memory_space<vmem>>, %arg4: memref<1x32xf32, #tpu.memory_space<vmem>>, %arg5: memref<32x16xf32, #tpu.memory_space<vmem>>, %arg6: memref<1x16xf32, #tpu.memory_space<vmem>>, %arg7: memref<16x128xf32, #tpu.memory_space<vmem>>, %arg8: memref<1x128xf32, #tpu.memory_space<vmem>>, %arg9: memref<16x128xf32, #tpu.memory_space<vmem>>) attributes {dimension_semantics = [], scalar_prefetch = 0 : i64, scratch_operands = 0 : i64, tpu.core_type = #tpu.core_type<tc>} {
    %c0 = arith.constant 0 : index
    %c0_0 = arith.constant 0 : index
    %0 = vector.load %arg0[%c0, %c0_0] : memref<16x16xf32, #tpu.memory_space<vmem>>, vector<16x16xf32>
    %c0_1 = arith.constant 0 : index
    %c0_2 = arith.constant 0 : index
    %1 = vector.load %arg1[%c0_1, %c0_2] : memref<16x32xf32, #tpu.memory_space<vmem>>, vector<16x32xf32>
    %cst = arith.constant dense<0.000000e+00> : vector<16x32xf32>
    %2 = tpu.matmul %0, %1, %cst {dimension_numbers = #tpu.dot_dimension_numbers<[1], [0], [0], [1], [0, 0, 1, 1], [], []>} : vector<16x16xf32>, vector<16x32xf32>, vector<16x32xf32> -> vector<16x32xf32>
    %c0_3 = arith.constant 0 : index
    %c0_4 = arith.constant 0 : index
    %3 = vector.load %arg2[%c0_3, %c0_4] : memref<1x32xf32, #tpu.memory_space<vmem>>, vector<1x32xf32>
    %4 = vector.broadcast %3 : vector<1x32xf32> to vector<16x32xf32>
    %5 = arith.addf %2, %4 : vector<16x32xf32>
    %cst_5 = arith.constant 0.000000e+00 : f32
    %6 = vector.broadcast %cst_5 : f32 to vector<16x32xf32>
    %7 = arith.maximumf %5, %6 : vector<16x32xf32>
    %c0_6 = arith.constant 0 : index
    %c0_7 = arith.constant 0 : index
    %8 = vector.load %arg3[%c0_6, %c0_7] : memref<32x32xf32, #tpu.memory_space<vmem>>, vector<32x32xf32>
    %cst_8 = arith.constant dense<0.000000e+00> : vector<16x32xf32>
    %9 = tpu.matmul %7, %8, %cst_8 {dimension_numbers = #tpu.dot_dimension_numbers<[1], [0], [0], [1], [0, 0, 1, 1], [], []>} : vector<16x32xf32>, vector<32x32xf32>, vector<16x32xf32> -> vector<16x32xf32>
    %c0_9 = arith.constant 0 : index
    %c0_10 = arith.constant 0 : index
    %10 = vector.load %arg4[%c0_9, %c0_10] : memref<1x32xf32, #tpu.memory_space<vmem>>, vector<1x32xf32>
    %11 = vector.broadcast %10 : vector<1x32xf32> to vector<16x32xf32>
    %12 = arith.addf %9, %11 : vector<16x32xf32>
    %cst_11 = arith.constant 0.000000e+00 : f32
    %13 = vector.broadcast %cst_11 : f32 to vector<16x32xf32>
    %14 = arith.maximumf %12, %13 : vector<16x32xf32>
    %c0_12 = arith.constant 0 : index
    %c0_13 = arith.constant 0 : index
    %15 = vector.load %arg5[%c0_12, %c0_13] : memref<32x16xf32, #tpu.memory_space<vmem>>, vector<32x16xf32>
    %cst_14 = arith.constant dense<0.000000e+00> : vector<16x16xf32>
    %16 = tpu.matmul %14, %15, %cst_14 {dimension_numbers = #tpu.dot_dimension_numbers<[1], [0], [0], [1], [0, 0, 1, 1], [], []>} : vector<16x32xf32>, vector<32x16xf32>, vector<16x16xf32> -> vector<16x16xf32>
    %c0_15 = arith.constant 0 : index
    %c0_16 = arith.constant 0 : index
    %17 = vector.load %arg6[%c0_15, %c0_16] : memref<1x16xf32, #tpu.memory_space<vmem>>, vector<1x16xf32>
    %18 = vector.broadcast %17 : vector<1x16xf32> to vector<16x16xf32>
    %19 = arith.addf %16, %18 : vector<16x16xf32>
    %cst_17 = arith.constant 0.000000e+00 : f32
    %20 = vector.broadcast %cst_17 : f32 to vector<16x16xf32>
    %21 = arith.maximumf %19, %20 : vector<16x16xf32>
    %c0_18 = arith.constant 0 : index
    %c0_19 = arith.constant 0 : index
    %22 = vector.load %arg7[%c0_18, %c0_19] : memref<16x128xf32, #tpu.memory_space<vmem>>, vector<16x128xf32>
    %cst_20 = arith.constant dense<0.000000e+00> : vector<16x128xf32>
    %23 = tpu.matmul %21, %22, %cst_20 {dimension_numbers = #tpu.dot_dimension_numbers<[1], [0], [0], [1], [0, 0, 1, 1], [], []>} : vector<16x16xf32>, vector<16x128xf32>, vector<16x128xf32> -> vector<16x128xf32>
    %c0_21 = arith.constant 0 : index
    %c0_22 = arith.constant 0 : index
    %24 = vector.load %arg8[%c0_21, %c0_22] : memref<1x128xf32, #tpu.memory_space<vmem>>, vector<1x128xf32>
    %25 = vector.broadcast %24 : vector<1x128xf32> to vector<16x128xf32>
    %26 = arith.addf %23, %25 : vector<16x128xf32>
    %c0_23 = arith.constant 0 : index
    %c0_24 = arith.constant 0 : index
    %27 = vector.load %arg9[%c0_23, %c0_24] : memref<16x128xf32, #tpu.memory_space<vmem>>, vector<16x128xf32>
    tpu.vector_store %arg9[%c0_23, %c0_24], %26 {strides = array<i32>} : memref<16x128xf32, #tpu.memory_space<vmem>>, vector<16x128xf32>,
    return
  }
}

</mosaic_0001>

<llo_original>
// kernel: tpu_custom_call.1
$region0: #{tpu_custom_call.1}
  #allocation0 [shape = 'u32[]', space=smem, size = 0x4, offset = 0x4, fixed_abs, tag = 'smem constant byte address 0x4 - core index']
  #allocation1 [shape = 'u32[144,128]{1,0:T(1,128)}', space=vmem, size = 0x12000, scoped, tag = 'internal scratch']
  %s0 = inlined_call_operand.vmem [shape: f32[16,16], index: 0, kind: input, shape index: {}]
  %s1 = inlined_call_operand.hbm [shape: f32[16,32], index: 1, kind: input, shape index: {}]
  %s2 = inlined_call_operand.vmem [shape: f32[1,32], index: 2, kind: input, shape index: {}]
  %s3 = inlined_call_operand.vmem [shape: f32[32,32], index: 3, kind: input, shape index: {}]
  %s4 = inlined_call_operand.vmem [shape: f32[1,32], index: 4, kind: input, shape index: {}]
  %s5 = inlined_call_operand.vmem [shape: f32[32,16], index: 5, kind: input, shape index: {}]
  %s6 = inlined_call_operand.vmem [shape: f32[1,16], index: 6, kind: input, shape index: {}]
  %s7 = inlined_call_operand.hbm [shape: f32[16,128], index: 7, kind: input, shape index: {}]
  %s8 = inlined_call_operand.vmem [shape: f32[1,128], index: 8, kind: input, shape index: {}]
  %s9 = inlined_call_operand.hbm [shape: f32[16,128], index: 9, kind: output, shape index: {}]
  %s10 = sld [smem:[#allocation0]]
  $region54: #{tpu_custom_call.1} parent=0
    _
  %s12 = ssub.s32 1, %s10
  %s13 = scalar_select 0, %s12, %s10
  $region1: #{tpu_custom_call.1} parent=0
    #allocation2 [shape = 'u8[8192]{0}', space=vmem, size = 0x2000, scoped, tag = 'input window, operand 1, single buffered']
    #allocation3 [shape = 's32[1]{0}', space=sflag, size = 0x4, scoped, tag = 'scoped memory for tpu_custom_call.1']
    #allocation4 [shape = 's32[1]{0}', space=sflag, size = 0x4, scoped, tag = 'scoped memory for tpu_custom_call.1']
    #allocation5 [shape = 'u8[8192]{0}', space=vmem, size = 0x2000, scoped, tag = 'input window, operand 7, single buffered']
    #allocation6 [shape = 's32[1]{0}', space=sflag, size = 0x4, scoped, tag = 'scoped memory for tpu_custom_call.1']
    #allocation7 [shape = 'u8[8192]{0}', space=vmem, size = 0x2000, scoped, tag = 'output window, operand 0, single buffered']
    %14 = vsyncpa [#allocation3], 0
    %15 = vsyncpa [#allocation6], 0
    %16 = vsyncpa [#allocation4], 0
    // Predicated region
    $region2: #{tpu_custom_call.1} parent=1 // pred_check
      _
    $region3: #{tpu_custom_call.1} parent=1 // pred_check_branch
      %18 = sbr.rel (0) target = $region5
    $region4: #{tpu_custom_call.1} parent=1 // pred_region
      _
    $region5: #{tpu_custom_call.1} parent=1 // pred_fallthru
      _
    // Predicated region
    $region6: #{tpu_custom_call.1} parent=1 // pred_check
      _
    $region7: #{tpu_custom_call.1} parent=1 // pred_check_branch
      %20 = sbr.rel (0) target = $region9
    $region8: #{tpu_custom_call.1} parent=1 // pred_region
      %s22 = ssub.s32 256, 256
      %23 = vsyncadd [#allocation3], %s22
      %s24 = sshll.u32 [#allocation2], 4
      %s25 = int_to_ptr.vmem [resolvable:$true] %s24
      %30 = dma.hbm_to_vmem [thread:$0]  %s1, 256, %s25, [#allocation3], 128, 128, 8
    $region9: #{tpu_custom_call.1} parent=1 // pred_fallthru
      _
    // Predicated region
    $region10: #{tpu_custom_call.1} parent=1 // pred_check
      _
    $region11: #{tpu_custom_call.1} parent=1 // pred_check_branch
      %32 = sbr.rel (0) target = $region13
    $region12: #{tpu_custom_call.1} parent=1 // pred_region
      _
    $region13: #{tpu_custom_call.1} parent=1 // pred_fallthru
      _
    // Predicated region
    $region14: #{tpu_custom_call.1} parent=1 // pred_check
      _
    $region15: #{tpu_custom_call.1} parent=1 // pred_check_branch
      %34 = sbr.rel (0) target = $region17
    $region16: #{tpu_custom_call.1} parent=1 // pred_region
      _
    $region17: #{tpu_custom_call.1} parent=1 // pred_fallthru
      _
    // Predicated region
    $region18: #{tpu_custom_call.1} parent=1 // pred_check
      _
    $region19: #{tpu_custom_call.1} parent=1 // pred_check_branch
      %36 = sbr.rel (0) target = $region21
    $region20: #{tpu_custom_call.1} parent=1 // pred_region
      _
    $region21: #{tpu_custom_call.1} parent=1 // pred_fallthru
      _
    // Predicated region
    $region22: #{tpu_custom_call.1} parent=1 // pred_check
      _
    $region23: #{tpu_custom_call.1} parent=1 // pred_check_branch
      %38 = sbr.rel (0) target = $region25
    $region24: #{tpu_custom_call.1} parent=1 // pred_region
      _
    $region25: #{tpu_custom_call.1} parent=1 // pred_fallthru
      _
    // Predicated region
    $region26: #{tpu_custom_call.1} parent=1 // pred_check
      _
    $region27: #{tpu_custom_call.1} parent=1 // pred_check_branch
      %40 = sbr.rel (0) target = $region29
    $region28: #{tpu_custom_call.1} parent=1 // pred_region
      _
    $region29: #{tpu_custom_call.1} parent=1 // pred_fallthru
      _
    // Predicated region
    $region30: #{tpu_custom_call.1} parent=1 // pred_check
      _
    $region31: #{tpu_custom_call.1} parent=1 // pred_check_branch
      %42 = sbr.rel (0) target = $region33
    $region32: #{tpu_custom_call.1} parent=1 // pred_region
      %s44 = ssub.s32 256, 256
      %45 = vsyncadd [#allocation6], %s44
      %s46 = sshll.u32 [#allocation5], 4
      %s47 = int_to_ptr.vmem [resolvable:$true] %s46
      %52 = dma.hbm_to_vmem [thread:$0]  %s7, 256, %s47, [#allocation6], 128, 128, 8
    $region33: #{tpu_custom_call.1} parent=1 // pred_fallthru
      _
    // Predicated region
    $region34: #{tpu_custom_call.1} parent=1 // pred_check
      _
    $region35: #{tpu_custom_call.1} parent=1 // pred_check_branch
      %54 = sbr.rel (0) target = $region37
    $region36: #{tpu_custom_call.1} parent=1 // pred_region
      _
    $region37: #{tpu_custom_call.1} parent=1 // pred_fallthru
      _
    // Predicated region
    $region38: #{tpu_custom_call.1} parent=1 // pred_check
      _
    $region39: #{tpu_custom_call.1} parent=1 // pred_check_branch
      %56 = sbr.rel (0) target = $region41
    $region40: #{tpu_custom_call.1} parent=1 // pred_region
      %57 = dma.done [#allocation3], 256
    $region41: #{tpu_custom_call.1} parent=1 // pred_fallthru
      _
    // Predicated region
    $region42: #{tpu_custom_call.1} parent=1 // pred_check
      _
    $region43: #{tpu_custom_call.1} parent=1 // pred_check_branch
      %59 = sbr.rel (0) target = $region45
    $region44: #{tpu_custom_call.1} parent=1 // pred_region
      %60 = dma.done [#allocation6], 256
    $region45: #{tpu_custom_call.1} parent=1 // pred_fallthru
      _
    %v61 = vld [vmem:[%s0] sm:$0xff]
    %v62 = vld [vmem:[%s0 + $0x8] sm:$0xff]
    %v63 = vld [vmem:[#allocation2] sm:$0xff]
    %v64 = vld [vmem:[#allocation2 + $0x8] sm:$0xff]
    %v65 = vld [vmem:[%s2] sm:$0x1]
    %v67 = vlaneseq
    %v68 = vshrl.u32 %v67, 7
    %v69 = vsub.s32 0, %v68
    %v70 = vrot.slane %v65, %v69
    %vm72 = vcmask 130048
    %v74 = vsel %vm72, %v61, 0
    %v77 = vsel %vm72, %v62, 0
    %79 = vmatprep.subr.mxu0 0.0
    %80 = vmatpush1.msra.mxu0 %v63
    %81 = vmatprep.subr.mxu0 0.0
    %82 = vmatpush1.msra.mxu0 %v64
    %83 = vmatprep.subr.mxu0 0.0
    %84 = vmatpush1.msra.mxu0 0.0
    %85 = vmatprep.subr.mxu0 0.0
    %86 = vmatpush1.msra.mxu0 0.0
    %87 = vmatprep.subr.mxu0 0.0
    %88 = vmatpush1.msra.mxu0 0.0
    %89 = vmatprep.subr.mxu0 0.0
    %90 = vmatpush1.msra.mxu0 0.0
    %91 = vmatprep.subr.mxu0 0.0
    %92 = vmatpush1.msra.mxu0 0.0
    %93 = vmatprep.subr.mxu0 0.0
    %94 = vmatpush1.msra.mxu0 0.0
    %95 = vmatprep.subr.mxu0 0.0
    %96 = vmatpush1.msra.mxu0 0.0
    %97 = vmatprep.subr.mxu0 0.0
    %98 = vmatpush1.msra.mxu0 0.0
    %99 = vmatprep.subr.mxu0 0.0
    %100 = vmatpush1.msra.mxu0 0.0
    %101 = vmatprep.subr.mxu0 0.0
    %102 = vmatpush1.msra.mxu0 0.0
    %103 = vmatprep.subr.mxu0 0.0
    %104 = vmatpush1.msra.mxu0 0.0
    %105 = vmatprep.subr.mxu0 0.0
    %106 = vmatpush1.msra.mxu0 0.0
    %107 = vmatprep.subr.mxu0 0.0
    %108 = vmatpush1.msra.mxu0 0.0
    %109 = vmatprep.subr.mxu0 0.0
    %110 = vmatpush1.msra.mxu0 0.0
    %111 = vmatprep.subr.mxu0 0.0
    %112 = vmatpush1.msra.mxu0 0.0
    %113 = vmatprep.subr.mxu0 0.0
    %114 = vmatpush1.msra.mxu0 0.0
    %115 = vmatprep.subr.mxu0 0.0
    %116 = vmatpush1.msra.mxu0 0.0
    %117 = vmatprep.subr.mxu0 0.0
    %118 = vmatpush1.msra.mxu0 0.0
    %119 = vmatprep.subr.mxu0 0.0
    %120 = vmatpush1.msra.mxu0 0.0
    %121 = vmatprep.subr.mxu0 0.0
    %122 = vmatpush1.msra.mxu0 0.0
    %123 = vmatprep.subr.mxu0 0.0
    %124 = vmatpush1.msra.mxu0 0.0
    %125 = vmatprep.subr.mxu0 0.0
    %126 = vmatpush1.msra.mxu0 0.0
    %127 = vmatprep.subr.mxu0 0.0
    %128 = vmatpush1.msra.mxu0 0.0
    %129 = vmatprep.subr.mxu0 0.0
    %130 = vmatpush1.msra.mxu0 0.0
    %131 = vmatprep.subr.mxu0 0.0
    %132 = vmatpush1.msra.mxu0 0.0
    %133 = vmatprep.subr.mxu0 0.0
    %134 = vmatpush1.msra.mxu0 0.0
    %135 = vmatprep.subr.mxu0 0.0
    %136 = vmatpush1.msra.mxu0 0.0
    %137 = vmatprep.subr.mxu0 0.0
    %138 = vmatpush1.msra.mxu0 0.0
    %139 = vmatprep.subr.mxu0 0.0
    %140 = vmatpush1.msra.mxu0 0.0
    %141 = vmatprep.subr.mxu0 0.0
    %142 = vmatpush1.msra.mxu0 0.0
    %143 = vmatprep.mubr.f32.mxu0 0.0
    %144 = vmatmul.mubr.f32.gmra.mrb[0].mxu0 %v74
    %v145 = vpop.f32.mrb[0].mxu0
    %v146 = vadd.f32 %v70, %v145
    %v147 = vpop.f32.mrb[0].mxu0
    %148 = vmatprep.mubr.f32.mxu0 0.0
    %149 = vmatmul.mubr.f32.gmra.mrb[0].mxu0 %v77
    %v150 = vpop.f32.mrb[0].mxu0
    %v151 = vadd.f32 %v70, %v150
    %v152 = vpop.f32.mrb[0].mxu0
    %153 = vdwg.mxu0
    %v154 = vmax.f32 %v146, 0.0
    %v155 = vmax.f32 %v151, 0.0
    %v156 = vld [vmem:[%s3] sm:$0xff]
    %v157 = vld [vmem:[%s3 + $0x8] sm:$0xff]
    %v158 = vld [vmem:[%s3 + $0x10] sm:$0xff]
    %v159 = vld [vmem:[%s3 + $0x18] sm:$0xff]
    %v160 = vld [vmem:[%s4] sm:$0x1]
    %v162 = vlaneseq
    %v163 = vshrl.u32 %v162, 7
    %v164 = vsub.s32 0, %v163
    %v165 = vrot.slane %v160, %v164
    %vm167 = vcmask 261120
    %v169 = vsel %vm167, %v154, 0
    %v172 = vsel %vm167, %v155, 0
    %174 = vmatprep.subr.mxu0 0.0
    %175 = vmatpush1.msra.mxu0 %v156
    %176 = vmatprep.subr.mxu0 0.0
    %177 = vmatpush1.msra.mxu0 %v157
    %178 = vmatprep.subr.mxu0 0.0
    %179 = vmatpush1.msra.mxu0 %v158
    %180 = vmatprep.subr.mxu0 0.0
    %181 = vmatpush1.msra.mxu0 %v159
    %182 = vmatprep.subr.mxu0 0.0
    %183 = vmatpush1.msra.mxu0 0.0
    %184 = vmatprep.subr.mxu0 0.0
    %185 = vmatpush1.msra.mxu0 0.0
    %186 = vmatprep.subr.mxu0 0.0
    %187 = vmatpush1.msra.mxu0 0.0
    %188 = vmatprep.subr.mxu0 0.0
    %189 = vmatpush1.msra.mxu0 0.0
    %190 = vmatprep.subr.mxu0 0.0
    %191 = vmatpush1.msra.mxu0 0.0
    %192 = vmatprep.subr.mxu0 0.0
    %193 = vmatpush1.msra.mxu0 0.0
    %194 = vmatprep.subr.mxu0 0.0
    %195 = vmatpush1.msra.mxu0 0.0
    %196 = vmatprep.subr.mxu0 0.0
    %197 = vmatpush1.msra.mxu0 0.0
    %198 = vmatprep.subr.mxu0 0.0
    %199 = vmatpush1.msra.mxu0 0.0
    %200 = vmatprep.subr.mxu0 0.0
    %201 = vmatpush1.msra.mxu0 0.0
    %202 = vmatprep.subr.mxu0 0.0
    %203 = vmatpush1.msra.mxu0 0.0
    %204 = vmatprep.subr.mxu0 0.0
    %205 = vmatpush1.msra.mxu0 0.0
    %206 = vmatprep.subr.mxu0 0.0
    %207 = vmatpush1.msra.mxu0 0.0
    %208 = vmatprep.subr.mxu0 0.0
    %209 = vmatpush1.msra.mxu0 0.0
    %210 = vmatprep.subr.mxu0 0.0
    %211 = vmatpush1.msra.mxu0 0.0
    %212 = vmatprep.subr.mxu0 0.0
    %213 = vmatpush1.msra.mxu0 0.0
    %214 = vmatprep.subr.mxu0 0.0
    %215 = vmatpush1.msra.mxu0 0.0
    %216 = vmatprep.subr.mxu0 0.0
    %217 = vmatpush1.msra.mxu0 0.0
    %218 = vmatprep.subr.mxu0 0.0
    %219 = vmatpush1.msra.mxu0 0.0
    %220 = vmatprep.subr.mxu0 0.0
    %221 = vmatpush1.msra.mxu0 0.0
    %222 = vmatprep.subr.mxu0 0.0
    %223 = vmatpush1.msra.mxu0 0.0
    %224 = vmatprep.subr.mxu0 0.0
    %225 = vmatpush1.msra.mxu0 0.0
    %226 = vmatprep.subr.mxu0 0.0
    %227 = vmatpush1.msra.mxu0 0.0
    %228 = vmatprep.subr.mxu0 0.0
    %229 = vmatpush1.msra.mxu0 0.0
    %230 = vmatprep.subr.mxu0 0.0
    %231 = vmatpush1.msra.mxu0 0.0
    %232 = vmatprep.subr.mxu0 0.0
    %233 = vmatpush1.msra.mxu0 0.0
    %234 = vmatprep.subr.mxu0 0.0
    %235 = vmatpush1.msra.mxu0 0.0
    %236 = vmatprep.subr.mxu0 0.0
    %237 = vmatpush1.msra.mxu0 0.0
    %238 = vmatprep.mubr.f32.mxu0 0.0
    %239 = vmatmul.mubr.f32.gmra.mrb[0].mxu0 %v169
    %v240 = vpop.f32.mrb[0].mxu0
    %v241 = vadd.f32 %v165, %v240
    %v242 = vpop.f32.mrb[0].mxu0
    %243 = vmatprep.mubr.f32.mxu0 0.0
    %244 = vmatmul.mubr.f32.gmra.mrb[0].mxu0 %v172
    %v245 = vpop.f32.mrb[0].mxu0
    %v246 = vadd.f32 %v165, %v245
    %v247 = vpop.f32.mrb[0].mxu0
    %248 = vdwg.mxu0
    %v249 = vmax.f32 %v241, 0.0
    %v250 = vmax.f32 %v246, 0.0
    %v251 = vld [vmem:[%s5] sm:$0xff]
    %v252 = vld [vmem:[%s5 + $0x8] sm:$0xff]
    %v253 = vld [vmem:[%s5 + $0x10] sm:$0xff]
    %v254 = vld [vmem:[%s5 + $0x18] sm:$0xff]
    %v255 = vld [vmem:[%s6] sm:$0x1]
    %v257 = vlaneseq
    %v258 = vshrl.u32 %v257, 7
    %v259 = vsub.s32 0, %v258
    %v260 = vrot.slane %v255, %v259
    %v263 = vsel %vm167, %v249, 0
    %v266 = vsel %vm167, %v250, 0
    %268 = vmatprep.subr.mxu0 0.0
    %269 = vmatpush1.msra.mxu0 %v251
    %270 = vmatprep.subr.mxu0 0.0
    %271 = vmatpush1.msra.mxu0 %v252
    %272 = vmatprep.subr.mxu0 0.0
    %273 = vmatpush1.msra.mxu0 %v253
    %274 = vmatprep.subr.mxu0 0.0
    %275 = vmatpush1.msra.mxu0 %v254
    %276 = vmatprep.subr.mxu0 0.0
    %277 = vmatpush1.msra.mxu0 0.0
    %278 = vmatprep.subr.mxu0 0.0
    %279 = vmatpush1.msra.mxu0 0.0
    %280 = vmatprep.subr.mxu0 0.0
    %281 = vmatpush1.msra.mxu0 0.0
    %282 = vmatprep.subr.mxu0 0.0
    %283 = vmatpush1.msra.mxu0 0.0
    %284 = vmatprep.subr.mxu0 0.0
    %285 = vmatpush1.msra.mxu0 0.0
    %286 = vmatprep.subr.mxu0 0.0
    %287 = vmatpush1.msra.mxu0 0.0
    %288 = vmatprep.subr.mxu0 0.0
    %289 = vmatpush1.msra.mxu0 0.0
    %290 = vmatprep.subr.mxu0 0.0
    %291 = vmatpush1.msra.mxu0 0.0
    %292 = vmatprep.subr.mxu0 0.0
    %293 = vmatpush1.msra.mxu0 0.0
    %294 = vmatprep.subr.mxu0 0.0
    %295 = vmatpush1.msra.mxu0 0.0
    %296 = vmatprep.subr.mxu0 0.0
    %297 = vmatpush1.msra.mxu0 0.0
    %298 = vmatprep.subr.mxu0 0.0
    %299 = vmatpush1.msra.mxu0 0.0
    %300 = vmatprep.subr.mxu0 0.0
    %301 = vmatpush1.msra.mxu0 0.0
    %302 = vmatprep.subr.mxu0 0.0
    %303 = vmatpush1.msra.mxu0 0.0
    %304 = vmatprep.subr.mxu0 0.0
    %305 = vmatpush1.msra.mxu0 0.0
    %306 = vmatprep.subr.mxu0 0.0
    %307 = vmatpush1.msra.mxu0 0.0
    %308 = vmatprep.subr.mxu0 0.0
    %309 = vmatpush1.msra.mxu0 0.0
    %310 = vmatprep.subr.mxu0 0.0
    %311 = vmatpush1.msra.mxu0 0.0
    %312 = vmatprep.subr.mxu0 0.0
    %313 = vmatpush1.msra.mxu0 0.0
    %314 = vmatprep.subr.mxu0 0.0
    %315 = vmatpush1.msra.mxu0 0.0
    %316 = vmatprep.subr.mxu0 0.0
    %317 = vmatpush1.msra.mxu0 0.0
    %318 = vmatprep.subr.mxu0 0.0
    %319 = vmatpush1.msra.mxu0 0.0
    %320 = vmatprep.subr.mxu0 0.0
    %321 = vmatpush1.msra.mxu0 0.0
    %322 = vmatprep.subr.mxu0 0.0
    %323 = vmatpush1.msra.mxu0 0.0
    %324 = vmatprep.subr.mxu0 0.0
    %325 = vmatpush1.msra.mxu0 0.0
    %326 = vmatprep.subr.mxu0 0.0
    %327 = vmatpush1.msra.mxu0 0.0
    %328 = vmatprep.subr.mxu0 0.0
    %329 = vmatpush1.msra.mxu0 0.0
    %330 = vmatprep.subr.mxu0 0.0
    %331 = vmatpush1.msra.mxu0 0.0
    %332 = vmatprep.mubr.f32.mxu0 0.0
    %333 = vmatmul.mubr.f32.gmra.mrb[0].mxu0 %v263
    %v334 = vpop.f32.mrb[0].mxu0
    %v335 = vadd.f32 %v260, %v334
    %v336 = vpop.f32.mrb[0].mxu0
    %337 = vmatprep.mubr.f32.mxu0 0.0
    %338 = vmatmul.mubr.f32.gmra.mrb[0].mxu0 %v266
    %v339 = vpop.f32.mrb[0].mxu0
    %v340 = vadd.f32 %v260, %v339
    %v341 = vpop.f32.mrb[0].mxu0
    %342 = vdwg.mxu0
    %v343 = vmax.f32 %v335, 0.0
    %v344 = vmax.f32 %v340, 0.0
    %v345 = vld [vmem:[#allocation5] sm:$0xff]
    %v346 = vld [vmem:[#allocation5 + $0x8] sm:$0xff]
    %v347 = vld [vmem:[%s8] sm:$0x1]
    %v349 = vlaneseq
    %v350 = vshrl.u32 %v349, 7
    %v351 = vsub.s32 0, %v350
    %v352 = vrot.slane %v347, %v351
    %v355 = vsel %vm72, %v343, 0
    %v358 = vsel %vm72, %v344, 0
    %360 = vmatprep.subr.mxu0 0.0
    %361 = vmatpush1.msra.mxu0 %v345
    %362 = vmatprep.subr.mxu0 0.0
    %363 = vmatpush1.msra.mxu0 %v346
    %364 = vmatprep.subr.mxu0 0.0
    %365 = vmatpush1.msra.mxu0 0.0
    %366 = vmatprep.subr.mxu0 0.0
    %367 = vmatpush1.msra.mxu0 0.0
    %368 = vmatprep.subr.mxu0 0.0
    %369 = vmatpush1.msra.mxu0 0.0
    %370 = vmatprep.subr.mxu0 0.0
    %371 = vmatpush1.msra.mxu0 0.0
    %372 = vmatprep.subr.mxu0 0.0
    %373 = vmatpush1.msra.mxu0 0.0
    %374 = vmatprep.subr.mxu0 0.0
    %375 = vmatpush1.msra.mxu0 0.0
    %376 = vmatprep.subr.mxu0 0.0
    %377 = vmatpush1.msra.mxu0 0.0
    %378 = vmatprep.subr.mxu0 0.0
    %379 = vmatpush1.msra.mxu0 0.0
    %380 = vmatprep.subr.mxu0 0.0
    %381 = vmatpush1.msra.mxu0 0.0
    %382 = vmatprep.subr.mxu0 0.0
    %383 = vmatpush1.msra.mxu0 0.0
    %384 = vmatprep.subr.mxu0 0.0
    %385 = vmatpush1.msra.mxu0 0.0
    %386 = vmatprep.subr.mxu0 0.0
    %387 = vmatpush1.msra.mxu0 0.0
    %388 = vmatprep.subr.mxu0 0.0
    %389 = vmatpush1.msra.mxu0 0.0
    %390 = vmatprep.subr.mxu0 0.0
    %391 = vmatpush1.msra.mxu0 0.0
    %392 = vmatprep.subr.mxu0 0.0
    %393 = vmatpush1.msra.mxu0 0.0
    %394 = vmatprep.subr.mxu0 0.0
    %395 = vmatpush1.msra.mxu0 0.0
    %396 = vmatprep.subr.mxu0 0.0
    %397 = vmatpush1.msra.mxu0 0.0
    %398 = vmatprep.subr.mxu0 0.0
    %399 = vmatpush1.msra.mxu0 0.0
    %400 = vmatprep.subr.mxu0 0.0
    %401 = vmatpush1.msra.mxu0 0.0
    %402 = vmatprep.subr.mxu0 0.0
    %403 = vmatpush1.msra.mxu0 0.0
    %404 = vmatprep.subr.mxu0 0.0
    %405 = vmatpush1.msra.mxu0 0.0
    %406 = vmatprep.subr.mxu0 0.0
    %407 = vmatpush1.msra.mxu0 0.0
    %408 = vmatprep.subr.mxu0 0.0
    %409 = vmatpush1.msra.mxu0 0.0
    %410 = vmatprep.subr.mxu0 0.0
    %411 = vmatpush1.msra.mxu0 0.0
    %412 = vmatprep.subr.mxu0 0.0
    %413 = vmatpush1.msra.mxu0 0.0
    %414 = vmatprep.subr.mxu0 0.0
    %415 = vmatpush1.msra.mxu0 0.0
    %416 = vmatprep.subr.mxu0 0.0
    %417 = vmatpush1.msra.mxu0 0.0
    %418 = vmatprep.subr.mxu0 0.0
    %419 = vmatpush1.msra.mxu0 0.0
    %420 = vmatprep.subr.mxu0 0.0
    %421 = vmatpush1.msra.mxu0 0.0
    %422 = vmatprep.subr.mxu0 0.0
    %423 = vmatpush1.msra.mxu0 0.0
    %424 = vmatprep.mubr.f32.mxu0 0.0
    %425 = vmatmul.mubr.f32.gmra.mrb[0].mxu0 %v355
    %v426 = vpop.f32.mrb[0].mxu0
    %v427 = vadd.f32 %v352, %v426
    %v428 = vpop.f32.mrb[0].mxu0
    %429 = vmatprep.mubr.f32.mxu0 0.0
    %430 = vmatmul.mubr.f32.gmra.mrb[0].mxu0 %v358
    %v431 = vpop.f32.mrb[0].mxu0
    %v432 = vadd.f32 %v352, %v431
    %v433 = vpop.f32.mrb[0].mxu0
    %434 = vdwg.mxu0
    %435 = vst [vmem:[#allocation7] sm:$0xff] %v427
    %436 = vst [vmem:[#allocation7 + $0x8] sm:$0xff] %v432
    // Predicated region
    $region46: #{tpu_custom_call.1} parent=1 // pred_check
      _
    $region47: #{tpu_custom_call.1} parent=1 // pred_check_branch
      %438 = sbr.rel (0) target = $region49
    $region48: #{tpu_custom_call.1} parent=1 // pred_region
      %s440 = ssub.s32 256, 256
      %441 = vsyncadd [#allocation4], %s440
      %s442 = sshll.u32 [#allocation7], 4
      %s443 = int_to_ptr.vmem [resolvable:$true] %s442
      %448 = dma.vmem_to_hbm [thread:$0]  %s443, 256, %s9, [#allocation4], 128, 128, 8
    $region49: #{tpu_custom_call.1} parent=1 // pred_fallthru
      _
    // Predicated region
    $region50: #{tpu_custom_call.1} parent=1 // pred_check
      _
    $region51: #{tpu_custom_call.1} parent=1 // pred_check_branch
      %450 = sbr.rel (0) target = $region53
    $region52: #{tpu_custom_call.1} parent=1 // pred_region
      %451 = dma.done [#allocation4], 256
    $region53: #{tpu_custom_call.1} parent=1 // pred_fallthru
      _
    %452 = vsyncpa [#allocation3], 1
    %453 = vsyncpa [#allocation6], 1
    %454 = vsyncpa [#allocation4], 1

</llo_original>
